<compile_context>
chip_gen: v7x
topology: tpu7x:2x2x1
jax: 0.10.0
libtpu: 0.0.40
codegen_flags: <defaults>
</compile_context>

<pallas_src>
import functools

import jax
import jax.numpy as jnp
from jax.experimental import pallas as pl
from jax.experimental.pallas import tpu as pltpu


def _round_up(x, m):
    return ((x + m - 1) // m) * m


def _conv_bn_relu_kernel(w_ref, shift_ref, p_ref, o_ref, *, apply_relu):
    # w_ref:     (OC, Kp)  bf16  (BN scale already folded into the weights)
    # shift_ref: (OC, 1)   f32   (BN shift)
    # p_ref:     (Kp, TL)  bf16  (im2col patches of one image, lane tile TL)
    # o_ref:     (OC, TL)  f32   (lane-dense output block)
    acc = jax.lax.dot_general(
        w_ref[...], p_ref[...],
        dimension_numbers=(((1,), (0,)), ((), ())),
        preferred_element_type=jnp.float32)              # MXU, f32 accumulate
    y = acc + shift_ref[...]                             # BatchNorm (eval) shift
    if apply_relu:                                       # QuantReLU -> ReLU
        y = jnp.maximum(y, 0.0)
    o_ref[...] = y.astype(o_ref.dtype)


def _im2col_nkl(x, kh, kw, stride, padding):
    """x: (N, C, H, W) -> patches (N, C*KH*KW, OH*OW); K order = (c, kh, kw)."""
    n, c, h, w = x.shape
    oh = (h + 2 * padding - kh) // stride + 1
    ow = (w + 2 * padding - kw) // stride + 1
    xp = jnp.pad(x, ((0, 0), (0, 0), (padding, padding), (padding, padding)))
    slabs = []
    for i in range(kh):
        for j in range(kw):
            slabs.append(
                xp[:, :, i:i + stride * oh:stride, j:j + stride * ow:stride])
    p = jnp.stack(slabs, axis=0)                  # (KH*KW, N, C, OH, OW)
    p = jnp.transpose(p, (1, 2, 0, 3, 4))         # (N, C, KH*KW, OH, OW)
    return p.reshape(n, c * kh * kw, oh * ow), (oh, ow)


@functools.partial(jax.jit,
                   static_argnames=("stride", "padding", "requantize", "eps"))
def basic_conv2d(x, weight, gamma, beta, running_mean, running_var, *,
                 stride=1, padding=0, requantize=True, eps=1e-3):
    """x: (N, C, H, W) f32; weight: (OC, C, KH, KW) f32 -> (N, OC, OH, OW) f32."""
    oc, c, kh, kw = weight.shape
    n = x.shape[0]
    k = c * kh * kw

    # Fold BatchNorm (eval mode) into the conv: scale -> weights, shift -> bias.
    scale = gamma / jnp.sqrt(running_var + eps)               # (OC,)
    shift = (beta - running_mean * scale).reshape(oc, 1)      # (OC, 1), f32
    w_mat = weight.reshape(oc, k) * scale[:, None]            # (OC, K), f32

    # im2col in (N, K, L) layout, bf16 operands (halves the HBM traffic of the
    # KH*KW-expanded patch matrix); f32 accumulation happens in the kernel.
    patches, (oh, ow) = _im2col_nkl(x.astype(jnp.bfloat16), kh, kw,
                                    stride, padding)
    l = oh * ow

    # Dense contraction dim (zero-padded rows contribute exactly zero).
    k_pad = _round_up(k, 128)

    # Lane tile: multiple of 128, as large as a conservative per-buffer VMEM
    # budget allows (double-buffered bf16 patches block must fit comfortably
    # even on v7x's smaller VMEM). For these shapes it is the whole image.
    per_buf_budget = 4 * 1024 * 1024                          # bytes per buffer
    tl_cap = max(128, (per_buf_budget // (2 * k_pad)) // 128 * 128)
    tl = min(_round_up(l, 128), tl_cap, 2048)
    l_pad = _round_up(l, tl)

    patches = jnp.pad(patches, ((0, 0), (0, k_pad - k), (0, l_pad - l)))
    w_mat = jnp.pad(w_mat, ((0, 0), (0, k_pad - k))).astype(jnp.bfloat16)

    kernel = functools.partial(_conv_bn_relu_kernel, apply_relu=requantize)
    out = pl.pallas_call(
        kernel,
        out_shape=jax.ShapeDtypeStruct((n, oc, l_pad), jnp.float32),
        grid_spec=pltpu.PrefetchScalarGridSpec(
            num_scalar_prefetch=0,
            grid=(n, l_pad // tl),
            in_specs=[
                pl.BlockSpec((oc, k_pad), lambda b, j: (0, 0)),   # weights (resident)
                pl.BlockSpec((oc, 1), lambda b, j: (0, 0)),       # BN shift
                pl.BlockSpec((None, k_pad, tl), lambda b, j: (b, 0, j)),
            ],
            out_specs=pl.BlockSpec((None, oc, tl), lambda b, j: (b, 0, j)),
        ),
        compiler_params=pltpu.CompilerParams(
            dimension_semantics=("parallel", "parallel")),
    )(w_mat, shift, patches)

    # (N, OC, L) -> (N, OC, OH, OW): plain reshape, no post-kernel transpose.
    return out[:, :, :l].reshape(n, oc, oh, ow)


if __name__ == "__main__":
    key = jax.random.PRNGKey(0)
    k1, k2, k3, k4, k5, k6 = jax.random.split(key, 6)

    # BasicConv2d(in_channels=4, out_channels=8, kernel_size=(3,3),
    #             stride=(1,1), padding=(1,1), bias=False)
    N, C, H, W = 2, 4, 16, 16
    OC, KH, KW = 8, 3, 3
    stride, padding = 1, 1

    x = jax.random.normal(k1, (N, C, H, W), dtype=jnp.float32)
    weight = jax.random.normal(k2, (OC, C, KH, KW), dtype=jnp.float32) * 0.1
    gamma = jax.random.uniform(k3, (OC,), jnp.float32, 0.5, 1.5)
    beta = jax.random.normal(k4, (OC,), jnp.float32) * 0.1
    running_mean = jax.random.normal(k5, (OC,), jnp.float32) * 0.1
    running_var = jax.random.uniform(k6, (OC,), jnp.float32, 0.5, 1.5)

    out = basic_conv2d(x, weight, gamma, beta, running_mean, running_var,
                       stride=stride, padding=padding, requantize=True)
    jax.block_until_ready(out)
    assert out.shape == (N, OC, H, W)

    eps = 1e-3
    scale = gamma / jnp.sqrt(running_var + eps)
    shift = beta - running_mean * scale

    # Tight check: reference computed on the same bf16-rounded operands
    # (matches the kernel's bf16-operand / f32-accumulate numerics).
    w_folded = (weight.reshape(OC, -1) * scale[:, None]).reshape(OC, C, KH, KW)
    ref_bf16 = jax.lax.conv_general_dilated(
        x.astype(jnp.bfloat16), w_folded.astype(jnp.bfloat16),
        window_strides=(stride, stride),
        padding=[(padding, padding), (padding, padding)],
        dimension_numbers=("NCHW", "OIHW", "NCHW"),
        preferred_element_type=jnp.float32)
    ref_tight = jnp.maximum(ref_bf16 + shift.reshape(1, OC, 1, 1), 0.0)
    assert jnp.allclose(out, ref_tight, atol=5e-3, rtol=5e-3)

    # Loose check: full f32 reference (bounds the bf16 operand rounding error).
    ref_f32 = jax.lax.conv_general_dilated(
        x, weight, window_strides=(stride, stride),
        padding=[(padding, padding), (padding, padding)],
        dimension_numbers=("NCHW", "OIHW", "NCHW"))
    ref = jnp.maximum(ref_f32 * scale.reshape(1, OC, 1, 1)
                      + shift.reshape(1, OC, 1, 1), 0.0)
    assert jnp.allclose(out, ref, atol=5e-2, rtol=5e-2)

    print("KERNEL_OK")
</pallas_src>

<mosaic_0001>
module attributes {stable_mosaic.version = 11 : i64} {
  func.func @_conv_bn_relu_kernel(%arg0: i32, %arg1: i32, %arg2: memref<8x128xbf16, #tpu.memory_space<vmem>>, %arg3: memref<8x1xf32, #tpu.memory_space<vmem>>, %arg4: memref<1x128x256xbf16, #tpu.memory_space<vmem>>, %arg5: memref<1x8x256xf32, #tpu.memory_space<vmem>>) attributes {dimension_semantics = [#tpu.dimension_semantics<parallel>, #tpu.dimension_semantics<parallel>], iteration_bounds = array<i64: 2, 1>, scalar_prefetch = 0 : i64, scratch_operands = 0 : i64, tpu.core_type = #tpu.core_type<tc>, window_params = [{pipeline_mode = #tpu.pipeline_mode<synchronous>, transform_indices = @transform_0, window_bounds = array<i64: 8, 128>}, {pipeline_mode = #tpu.pipeline_mode<synchronous>, transform_indices = @transform_1, window_bounds = array<i64: 8, 1>}, {transform_indices = @transform_2, window_bounds = array<i64: 1, 128, 256>}, {transform_indices = @transform_3, window_bounds = array<i64: 1, 8, 256>}]} {
    %c0 = arith.constant 0 : index
    %c0_0 = arith.constant 0 : index
    %0 = vector.load %arg2[%c0, %c0_0] : memref<8x128xbf16, #tpu.memory_space<vmem>>, vector<8x128xbf16>
    %c0_1 = arith.constant 0 : index
    %c0_2 = arith.constant 0 : index
    %c0_3 = arith.constant 0 : index
    %1 = vector.load %arg4[%c0_1, %c0_2, %c0_3] : memref<1x128x256xbf16, #tpu.memory_space<vmem>>, vector<1x128x256xbf16>
    %2 = vector.shape_cast %1 : vector<1x128x256xbf16> to vector<128x256xbf16>
    %cst = arith.constant dense<0.000000e+00> : vector<8x256xf32>
    %3 = tpu.matmul %0, %2, %cst {dimension_numbers = #tpu.dot_dimension_numbers<[1], [0], [0], [1], [0, 0, 1, 1], [], []>} : vector<8x128xbf16>, vector<128x256xbf16>, vector<8x256xf32> -> vector<8x256xf32>
    %c0_4 = arith.constant 0 : index
    %c0_5 = arith.constant 0 : index
    %4 = vector.load %arg3[%c0_4, %c0_5] : memref<8x1xf32, #tpu.memory_space<vmem>>, vector<8x1xf32>
    %5 = vector.broadcast %4 : vector<8x1xf32> to vector<8x256xf32>
    %6 = arith.addf %3, %5 : vector<8x256xf32>
    %cst_6 = arith.constant 0.000000e+00 : f32
    %7 = vector.broadcast %cst_6 : f32 to vector<8x256xf32>
    %8 = arith.maximumf %6, %7 : vector<8x256xf32>
    %c0_7 = arith.constant 0 : index
    %c0_8 = arith.constant 0 : index
    %c0_9 = arith.constant 0 : index
    %9 = vector.load %arg5[%c0_7, %c0_8, %c0_9] : memref<1x8x256xf32, #tpu.memory_space<vmem>>, vector<1x8x256xf32>
    %10 = vector.shape_cast %9 : vector<1x8x256xf32> to vector<8x256xf32>
    %11 = vector.shape_cast %8 : vector<8x256xf32> to vector<1x8x256xf32>
    tpu.vector_store %arg5[%c0_7, %c0_8, %c0_9], %11 {strides = array<i32>} : memref<1x8x256xf32, #tpu.memory_space<vmem>>, vector<1x8x256xf32>,
    return
  }
  func.func @transform_0(%arg0: i32, %arg1: i32) -> (i32, i32) {
    %c0_i32 = arith.constant 0 : i32
    %c0_i32_0 = arith.constant 0 : i32
    %c0_i32_1 = arith.constant 0 : i32
    return %c0_i32, %c0_i32_0 : i32, i32
  }
  func.func @transform_1(%arg0: i32, %arg1: i32) -> (i32, i32) {
    %c0_i32 = arith.constant 0 : i32
    %c0_i32_0 = arith.constant 0 : i32
    %c0_i32_1 = arith.constant 0 : i32
    return %c0_i32, %c0_i32_0 : i32, i32
  }
  func.func @transform_2(%arg0: i32, %arg1: i32) -> (i32, i32, i32) {
    %c0_i32 = arith.constant 0 : i32
    %c0_i32_0 = arith.constant 0 : i32
    return %arg0, %c0_i32, %arg1 : i32, i32, i32
  }
  func.func @transform_3(%arg0: i32, %arg1: i32) -> (i32, i32, i32) {
    %c0_i32 = arith.constant 0 : i32
    %c0_i32_0 = arith.constant 0 : i32
    return %arg0, %c0_i32, %arg1 : i32, i32, i32
  }
}

</mosaic_0001>

<llo_original>
// kernel: basic_conv2d.1
$region0: #{basic_conv2d.1}
  #allocation0 [shape = 'u32[]', space=smem, size = 0x4, offset = 0x4, fixed_abs, tag = 'smem constant byte address 0x4 - core index']
  #allocation1 [shape = 'u32[144,128]{1,0:T(1,128)}', space=vmem, size = 0x12000, scoped, tag = 'internal scratch']
  %s0 = inlined_call_operand.vmem [shape: bf16[8,128], index: 0, kind: input, shape index: {}]
  %s1 = inlined_call_operand.vmem [shape: f32[8,1], index: 1, kind: input, shape index: {}]
  %s2 = inlined_call_operand.vmem [shape: bf16[2,128,256], index: 2, kind: input, shape index: {}]
  %s3 = inlined_call_operand.vmem [shape: f32[2,8,256], index: 3, kind: output, shape index: {}]
  %s4 = sld [smem:[#allocation0]]
  $region45: #{basic_conv2d.1} parent=0
    _
  %s6 = ssub.s32 1, %s4
  %s7 = scalar_select 0, %s6, %s4
  loop: start=0, step=1, limit=4
  $region2: #{basic_conv2d.1} parent=0 // loop_pre_header
    _
  $region3: #{basic_conv2d.1} parent=0 // loop_header
    %s9 = sphi 0, %s13
    %p10 = scmp.ge.s32.totalorder %s9, 4
    %s16 = sphi 0, %s28
    %s17 = sphi 0, %s24
    %s18 = sphi 0, %s16
    %s19 = sphi 0, %s17
    %s20 = sphi 0, %s18
    %s21 = sphi 0, %s19
    %s29 = sphi 0, %s29
    %s31 = sphi 0, %s29
    %s32 = sphi 0, %s31
    %s46 = sphi 0, %s32
    %s50 = sphi 0, %s50
    %s52 = sphi 0, %s50
    %s53 = sphi 0, %s52
    %s67 = sphi 0, %s53
    %s75 = sphi 0, %s77
    %s78 = sphi 0, %s75
    %s79 = sphi 0, %s78
    %s95 = sphi 0, %s79
    %s103 = sphi 0, %s105
    %s106 = sphi 0, %s103
    %s107 = sphi 0, %s106
    %s123 = sphi 0, %s107
  $region4: #{basic_conv2d.1} parent=0 // loop_header_branch
    %12 = sbr.rel (%p10) target = $region8
  $region5: #{basic_conv2d.1} parent=0 // loop_body
    %s14 = ssub.s32 %s9, 1
    %s15 = ssub.s32 %s9, 2
    %s22 = sadd.s32 1, %s17
    %p23 = scmp.ge.s32.totalorder %s22, 1
    %s24 = scalar_select %p23, 0, %s22
    %s25 = sadd.s32 1, %s16
    %s26 = scalar_select %p23, %s25, %s16
    %p27 = scmp.ge.s32.totalorder %s26, 2
    %s28 = scalar_select %p27, 0, %s26
    %s30 = sadd.s32 %s29, 1
    %p33 = scmp.eq.s32.totalorder %s9, 1
    %p34 = scmp.ne.s32.totalorder %s29, %s31
    %p35 = scmp.eq.s32.totalorder %s9, 0
    %p36 = por %p34, %p35
    %p37 = scmp.ne.s32.totalorder %s29, %s31
    %p38 = scmp.eq.s32.totalorder %s14, 1
    %p39 = por %p37, %p38
    %p40 = scmp.ne.s32.totalorder %s31, %s32
    %p41 = scmp.eq.s32.totalorder %s14, 0
    %p42 = por %p40, %p41
    %p43 = scmp.ne.s32.totalorder %s31, %s32
    %p44 = scmp.eq.s32.totalorder %s15, 1
    %p45 = por %p43, %p44
    %p47 = scmp.ne.s32.totalorder %s32, %s46
    %p48 = scmp.eq.s32.totalorder %s15, 0
    %p49 = por %p47, %p48
    %s51 = sadd.s32 %s50, 1
    %p54 = scmp.eq.s32.totalorder %s9, 1
    %p55 = scmp.ne.s32.totalorder %s50, %s52
    %p56 = scmp.eq.s32.totalorder %s9, 0
    %p57 = por %p55, %p56
    %p58 = scmp.ne.s32.totalorder %s50, %s52
    %p59 = scmp.eq.s32.totalorder %s14, 1
    %p60 = por %p58, %p59
    %p61 = scmp.ne.s32.totalorder %s52, %s53
    %p62 = scmp.eq.s32.totalorder %s14, 0
    %p63 = por %p61, %p62
    %p64 = scmp.ne.s32.totalorder %s52, %s53
    %p65 = scmp.eq.s32.totalorder %s15, 1
    %p66 = por %p64, %p65
    %p68 = scmp.ne.s32.totalorder %s53, %s67
    %p69 = scmp.eq.s32.totalorder %s15, 0
    %p70 = por %p68, %p69
    %s71 = ssub.s32 %s16, %s28
    %s72 = ssub.s32 %s17, %s24
    %s73 = sor.u32 %s71, %s72
    %p74 = scmp.eq.s32.totalorder %s73, 0
    %s76 = sadd.s32 %s75, 1
    %s77 = scalar_select %p74, %s75, %s76
    %p80 = pneg %p74
    %p81 = scmp.eq.s32.totalorder %s9, 1
    %p82 = por %p80, %p81
    %p83 = scmp.ne.s32.totalorder %s75, %s78
    %p84 = scmp.eq.s32.totalorder %s9, 0
    %p85 = por %p83, %p84
    %p86 = scmp.ne.s32.totalorder %s75, %s78
    %p87 = scmp.eq.s32.totalorder %s14, 1
    %p88 = por %p86, %p87
    %p89 = scmp.ne.s32.totalorder %s78, %s79
    %p90 = scmp.eq.s32.totalorder %s14, 0
    %p91 = por %p89, %p90
    %p92 = scmp.ne.s32.totalorder %s78, %s79
    %p93 = scmp.eq.s32.totalorder %s15, 1
    %p94 = por %p92, %p93
    %p96 = scmp.ne.s32.totalorder %s79, %s95
    %p97 = scmp.eq.s32.totalorder %s15, 0
    %p98 = por %p96, %p97
    %s99 = ssub.s32 %s16, %s28
    %s100 = ssub.s32 %s17, %s24
    %s101 = sor.u32 %s99, %s100
    %p102 = scmp.eq.s32.totalorder %s101, 0
    %s104 = sadd.s32 %s103, 1
    %s105 = scalar_select %p102, %s103, %s104
    %p108 = pneg %p102
    %p109 = scmp.eq.s32.totalorder %s9, 1
    %p110 = por %p108, %p109
    %p111 = scmp.ne.s32.totalorder %s103, %s106
    %p112 = scmp.eq.s32.totalorder %s9, 0
    %p113 = por %p111, %p112
    %p114 = scmp.ne.s32.totalorder %s103, %s106
    %p115 = scmp.eq.s32.totalorder %s14, 1
    %p116 = por %p114, %p115
    %p117 = scmp.ne.s32.totalorder %s106, %s107
    %p118 = scmp.eq.s32.totalorder %s14, 0
    %p119 = por %p117, %p118
    %p120 = scmp.ne.s32.totalorder %s106, %s107
    %p121 = scmp.eq.s32.totalorder %s15, 1
    %p122 = por %p120, %p121
    %p124 = scmp.ne.s32.totalorder %s107, %s123
    %p125 = scmp.eq.s32.totalorder %s15, 0
    %p126 = por %p124, %p125
    %p127 = scmp.le.s32.totalorder 1, %s9
    %p128 = scmp.lt.s32.totalorder %s9, 3
    %p129 = pnand %p127, %p128
    %p130 = pneg %p129
    // Predicated region
    $region9: #{basic_conv2d.1} parent=5 // pred_check
      _
    $region10: #{basic_conv2d.1} parent=5 // pred_check_branch
      %132 = sbr.rel (%p129) target = $region12
    $region11: #{basic_conv2d.1} parent=5 // pred_region
      %s133 = ssub.s32 %s9, 1
      // Predicated region
      $region13: #{basic_conv2d.1} parent=11 // pred_check
        %p134 = pneg %p42
      $region14: #{basic_conv2d.1} parent=11 // pred_check_branch
        %136 = sbr.rel (%p134) target = $region16
      $region15: #{basic_conv2d.1} parent=11 // pred_region
        _
      $region16: #{basic_conv2d.1} parent=11 // pred_fallthru
        _
      // Predicated region
      $region17: #{basic_conv2d.1} parent=11 // pred_check
        %p137 = pneg %p63
      $region18: #{basic_conv2d.1} parent=11 // pred_check_branch
        %139 = sbr.rel (%p137) target = $region20
      $region19: #{basic_conv2d.1} parent=11 // pred_region
        _
      $region20: #{basic_conv2d.1} parent=11 // pred_fallthru
        _
    $region12: #{basic_conv2d.1} parent=5 // pred_fallthru
      _
    %p140 = scmp.lt.s32.totalorder %s9, 2
    // Predicated region
    $region21: #{basic_conv2d.1} parent=5 // pred_check
      %p141 = pneg %p140
    $region22: #{basic_conv2d.1} parent=5 // pred_check_branch
      %143 = sbr.rel (%p141) target = $region24
    $region23: #{basic_conv2d.1} parent=5 // pred_region
      // Predicated region
      $region25: #{basic_conv2d.1} parent=23 // pred_check
        %p144 = pneg %p85
      $region26: #{basic_conv2d.1} parent=23 // pred_check_branch
        %146 = sbr.rel (%p144) target = $region28
      $region27: #{basic_conv2d.1} parent=23 // pred_region
        %s147 = smul.u32 2, %s17
        %p148 = scmp.lt.s32.totalorder %s16, 1
        %s149 = scalar_select %p148, %s16, 1
        %p150 = scmp.lt.s32.totalorder %s147, 1
        %s151 = scalar_select %p150, %s147, 1
        %s152 = smul.addr %s149, 32
        %s153 = sadd.s32 %s151, %s152
        %s154 = smul.addr %s153, 4
        %s155 = scalar_lea.vmem %s2, %s154
        %s156 = smul.u32 2, %s17
      $region28: #{basic_conv2d.1} parent=23 // pred_fallthru
        _
    $region24: #{basic_conv2d.1} parent=5 // pred_fallthru
      _
    %p157 = scmp.le.s32.totalorder 1, %s9
    %p158 = scmp.lt.s32.totalorder %s9, 3
    %p159 = pnand %p157, %p158
    %p160 = pneg %p159
    // Predicated region
    $region29: #{basic_conv2d.1} parent=5 // pred_check
      _
    $region30: #{basic_conv2d.1} parent=5 // pred_check_branch
      %162 = sbr.rel (%p159) target = $region32
    $region31: #{basic_conv2d.1} parent=5 // pred_region
      %s163 = ssub.s32 %s9, 1
      %p164 = pneg %p42
      %p165 = pneg %p39
      %p166 = pneg %p63
      %p167 = pneg %p60
      %s168 = smul.u32 2, %s19
      %p169 = scmp.lt.s32.totalorder %s18, 1
      %s170 = scalar_select %p169, %s18, 1
      %p171 = scmp.lt.s32.totalorder %s168, 1
      %s172 = scalar_select %p171, %s168, 1
      %s173 = smul.addr %s170, 32
      %s174 = sadd.s32 %s172, %s173
      %s175 = smul.addr %s174, 4
      %s176 = scalar_lea.vmem %s2, %s175
      %p177 = pneg %p91
      %p178 = pneg %p88
      %p179 = pneg %p119
      %p180 = pneg %p116
      %s181 = smul.u32 2, %s19
      %p182 = scmp.lt.s32.totalorder %s18, 1
      %s183 = scalar_select %p182, %s18, 1
      %p184 = scmp.lt.s32.totalorder %s181, 1
      %s185 = scalar_select %p184, %s181, 1
      %s186 = smul.addr %s183, 2
      %s187 = sadd.s32 %s185, %s186
      %s188 = smul.addr %s187, 8
      %s189 = scalar_lea.vmem %s3, %s188
      %s190 = smul.u32 2, %s19
      %p191 = scmp.lt.s32.totalorder %s18, 1
      %s192 = scalar_select %p191, %s18, 1
      %p193 = scmp.lt.s32.totalorder %s190, 1
      %s194 = scalar_select %p193, %s190, 1
      %s195 = smul.addr %s192, 32
      %s196 = sadd.s32 %s194, %s195
      %s197 = smul.addr %s196, 4
      %s198 = scalar_lea.vmem %s2, %s197
      %s199 = smul.u32 2, %s19
      %s200 = smul.u32 2, %s19
      %p201 = scmp.lt.s32.totalorder %s18, 1
      %s202 = scalar_select %p201, %s18, 1
      %p203 = scmp.lt.s32.totalorder %s200, 1
      %s204 = scalar_select %p203, %s200, 1
      %s205 = smul.addr %s202, 2
      %s206 = sadd.s32 %s204, %s205
      %s207 = smul.addr %s206, 8
      %s208 = scalar_lea.vmem %s3, %s207
      %s209 = smul.u32 2, %s19
      %v211 = vld [vmem:[%s0] sm:$0xf]
      %v212 = vld [vmem:[%s198] sm:$0xff]
      %v213 = vld [vmem:[%s198 + $0x8] sm:$0xff]
      %v214 = vld [vmem:[%s198 + $0x10] sm:$0xff]
      %v215 = vld [vmem:[%s198 + $0x18] sm:$0xff]
      %v216 = vld [vmem:[%s198 + $0x20] sm:$0xff]
      %v217 = vld [vmem:[%s198 + $0x28] sm:$0xff]
      %v218 = vld [vmem:[%s198 + $0x30] sm:$0xff]
      %v219 = vld [vmem:[%s198 + $0x38] sm:$0xff]
      %v220 = vld [vmem:[%s198 + $0x40] sm:$0xff]
      %v221 = vld [vmem:[%s198 + $0x48] sm:$0xff]
      %v222 = vld [vmem:[%s198 + $0x50] sm:$0xff]
      %v223 = vld [vmem:[%s198 + $0x58] sm:$0xff]
      %v224 = vld [vmem:[%s198 + $0x60] sm:$0xff]
      %v225 = vld [vmem:[%s198 + $0x68] sm:$0xff]
      %v226 = vld [vmem:[%s198 + $0x70] sm:$0xff]
      %v227 = vld [vmem:[%s198 + $0x78] sm:$0xff]
      %v228 = vld [vmem:[%s1] sm:$0xff]
      %230 = vset.pattern.permute.xlu0 0
      %231 = vperm.xlu0 %230, %v228
      %v232 = vpop.permute.xlu0 %231
      %v250 = vunpack.c.l.b16 %v212
      %v251 = vunpack.c.h.b16 %v212
      %v252 = vunpack.c.l.b16 %v213
      %v253 = vunpack.c.h.b16 %v213
      %v254 = vunpack.c.l.b16 %v214
      %v255 = vunpack.c.h.b16 %v214
      %v256 = vunpack.c.l.b16 %v215
      %v257 = vunpack.c.h.b16 %v215
      %v258 = vunpack.c.l.b16 %v216
      %v259 = vunpack.c.h.b16 %v216
      %v260 = vunpack.c.l.b16 %v217
      %v261 = vunpack.c.h.b16 %v217
      %v262 = vunpack.c.l.b16 %v218
      %v263 = vunpack.c.h.b16 %v218
      %v264 = vunpack.c.l.b16 %v219
      %v265 = vunpack.c.h.b16 %v219
      %v266 = vunpack.c.l.b16 %v220
      %v267 = vunpack.c.h.b16 %v220
      %v268 = vunpack.c.l.b16 %v221
      %v269 = vunpack.c.h.b16 %v221
      %v270 = vunpack.c.l.b16 %v222
      %v271 = vunpack.c.h.b16 %v222
      %v272 = vunpack.c.l.b16 %v223
      %v273 = vunpack.c.h.b16 %v223
      %v274 = vunpack.c.l.b16 %v224
      %v275 = vunpack.c.h.b16 %v224
      %v276 = vunpack.c.l.b16 %v225
      %v277 = vunpack.c.h.b16 %v225
      %v278 = vunpack.c.l.b16 %v226
      %v279 = vunpack.c.h.b16 %v226
      %v280 = vunpack.c.l.b16 %v227
      %v281 = vunpack.c.h.b16 %v227
      %v282 = vpack.c.b16 %v252, %v250
      %v283 = vpack.c.b16 %v253, %v251
      %v284 = vpack.c.b16 %v256, %v254
      %v285 = vpack.c.b16 %v257, %v255
      %v286 = vpack.c.b16 %v260, %v258
      %v287 = vpack.c.b16 %v261, %v259
      %v288 = vpack.c.b16 %v264, %v262
      %v289 = vpack.c.b16 %v265, %v263
      %v290 = vpack.c.b16 %v268, %v266
      %v291 = vpack.c.b16 %v269, %v267
      %v292 = vpack.c.b16 %v272, %v270
      %v293 = vpack.c.b16 %v273, %v271
      %v294 = vpack.c.b16 %v276, %v274
      %v295 = vpack.c.b16 %v277, %v275
      %v296 = vpack.c.b16 %v280, %v278
      %v297 = vpack.c.b16 %v281, %v279
      %314 = vmatprep.subr.bf16.mxu0 %v283
      %315 = vmatpush1.bf16.msra.mxu0 %v282
      %316 = vmatprep.subr.bf16.mxu0 %v285
      %317 = vmatpush1.bf16.msra.mxu0 %v284
      %318 = vmatprep.subr.bf16.mxu0 %v287
      %319 = vmatpush1.bf16.msra.mxu0 %v286
      %320 = vmatprep.subr.bf16.mxu0 %v289
      %321 = vmatpush1.bf16.msra.mxu0 %v288
      %322 = vmatprep.subr.bf16.mxu0 %v291
      %323 = vmatpush1.bf16.msra.mxu0 %v290
      %324 = vmatprep.subr.bf16.mxu0 %v293
      %325 = vmatpush1.bf16.msra.mxu0 %v292
      %326 = vmatprep.subr.bf16.mxu0 %v295
      %327 = vmatpush1.bf16.msra.mxu0 %v294
      %328 = vmatprep.subr.bf16.mxu0 %v297
      %329 = vmatpush1.bf16.msra.mxu0 %v296
      %330 = vmatprep.subr.bf16.mxu0 0
      %331 = vmatpush1.bf16.msra.mxu0 0
      %332 = vmatprep.subr.bf16.mxu0 0
      %333 = vmatpush1.bf16.msra.mxu0 0
      %334 = vmatprep.subr.bf16.mxu0 0
      %335 = vmatpush1.bf16.msra.mxu0 0
      %336 = vmatprep.subr.bf16.mxu0 0
      %337 = vmatpush1.bf16.msra.mxu0 0
      %338 = vmatprep.subr.bf16.mxu0 0
      %339 = vmatpush1.bf16.msra.mxu0 0
      %340 = vmatprep.subr.bf16.mxu0 0
      %341 = vmatpush1.bf16.msra.mxu0 0
      %342 = vmatprep.subr.bf16.mxu0 0
      %343 = vmatpush1.bf16.msra.mxu0 0
      %344 = vmatprep.subr.bf16.mxu0 0
      %345 = vmatpush1.bf16.msra.mxu0 0
      %346 = vmatprep.mubr.bf16.mxu0 0
      %347 = vmatmul.mubr.bf16.gmra.mrb[0].mxu0 %v211
      %v348 = vpop.f32.mrb[0].mxu0
      %v349 = vadd.f32 %v232, %v348
      %v350 = vpop.f32.mrb[0].mxu0
      %v351 = vadd.f32 %v232, %v350
      %v352 = vpop.f32.mrb[0].mxu0
      %v353 = vpop.f32.mrb[0].mxu0
      %354 = vdwg.mxu0
      %v355 = vmax.f32 %v349, 0.0
      %v356 = vmax.f32 %v351, 0.0
      %357 = vst [vmem:[%s208] sm:$0xff] %v355
      %358 = vst [vmem:[%s208 + $0x8] sm:$0xff] %v356
      %s359 = smul.u32 2, %s19
      %p360 = scmp.lt.s32.totalorder %s18, 1
      %s361 = scalar_select %p360, %s18, 1
      %p362 = scmp.lt.s32.totalorder %s359, 1
      %s363 = scalar_select %p362, %s359, 1
      %s364 = smul.addr %s361, 2
      %s365 = sadd.s32 %s363, %s364
      %s366 = smul.addr %s365, 8
      %s367 = scalar_lea.vmem %s3, %s366
      // Predicated region
      $region33: #{basic_conv2d.1} parent=31 // pred_check
        %p368 = pneg %p116
      $region34: #{basic_conv2d.1} parent=31 // pred_check_branch
        %370 = sbr.rel (%p368) target = $region36
      $region35: #{basic_conv2d.1} parent=31 // pred_region
        %s371 = smul.u32 2, %s19
      $region36: #{basic_conv2d.1} parent=31 // pred_fallthru
        _
    $region32: #{basic_conv2d.1} parent=5 // pred_fallthru
      _
    %p372 = scmp.le.s32.totalorder 2, %s9
    // Predicated region
    $region37: #{basic_conv2d.1} parent=5 // pred_check
      %p373 = pneg %p372
    $region38: #{basic_conv2d.1} parent=5 // pred_check_branch
      %375 = sbr.rel (%p373) target = $region40
    $region39: #{basic_conv2d.1} parent=5 // pred_region
      %s376 = ssub.s32 %s9, 2
      // Predicated region
      $region41: #{basic_conv2d.1} parent=39 // pred_check
        %p377 = pneg %p122
      $region42: #{basic_conv2d.1} parent=39 // pred_check_branch
        %379 = sbr.rel (%p377) target = $region44
      $region43: #{basic_conv2d.1} parent=39 // pred_region
        %s380 = smul.u32 2, %s21
        %p381 = scmp.lt.s32.totalorder %s20, 1
        %s382 = scalar_select %p381, %s20, 1
        %p383 = scmp.lt.s32.totalorder %s380, 1
        %s384 = scalar_select %p383, %s380, 1
        %s385 = smul.addr %s382, 2
        %s386 = sadd.s32 %s384, %s385
        %s387 = smul.addr %s386, 8
        %s388 = scalar_lea.vmem %s3, %s387
      $region44: #{basic_conv2d.1} parent=39 // pred_fallthru
        _
    $region40: #{basic_conv2d.1} parent=5 // pred_fallthru
      _
  $region6: #{basic_conv2d.1} parent=0 // loop_footer
    %s13 = sadd.s32 1, %s9
  $region7: #{basic_conv2d.1} parent=0 // loop_footer_branch
    %8 = sbr.rel target = $region3
  $region8: #{basic_conv2d.1} parent=0 // loop_exit
    _

</llo_original>
